<compile_context>
chip_gen: v5e
topology: v5e:2x2
jax: 0.10.0
libtpu: 0.0.40
codegen_flags: <defaults>
</compile_context>

<pallas_src>
import math

import numpy as np
import jax
import jax.numpy as jnp
from jax.experimental import pallas as pl
from jax.experimental.pallas import tpu as pltpu


# ---------------------------------------------------------------------------
# Kernel
# ---------------------------------------------------------------------------
def _nmlp_kernel(x_ref, wu_ref, wv_ref, wo_ref, out_ref, acc_ref):
    k = pl.program_id(1)

    @pl.when(k == 0)
    def _():
        acc_ref[...] = jnp.zeros_like(acc_ref)

    x = x_ref[...]                                              # (tm, dim) bf16
    # Per-chunk projections; su / sv*sqrt(dim) are pre-folded into the columns.
    u = jnp.dot(x, wu_ref[...], preferred_element_type=jnp.float32)
    v = jnp.dot(x, wv_ref[...], preferred_element_type=jnp.float32)
    # silu(v) = v * sigmoid(v); exp rides the EUP, approx reciprocal avoids a
    # full-rate VALU divide over the (tm, th) f32 tile.  f32 throughout.
    sig = pl.reciprocal(1.0 + jnp.exp(-v), approx=True)
    h = u * (v * sig)
    # Accumulate this hidden chunk's contribution to o = h @ Wo^T.
    acc_ref[...] += jnp.dot(h.astype(jnp.bfloat16), wo_ref[...],
                            preferred_element_type=jnp.float32)

    @pl.when(k == pl.num_programs(1) - 1)
    def _():
        o = acc_ref[...]
        # F.normalize(o, p=2, dim=-1) == o * rsqrt(max(sum(o^2), eps^2)).
        ssq = jnp.sum(o * o, axis=-1, keepdims=True)
        out_ref[...] = (o * jax.lax.rsqrt(jnp.maximum(ssq, jnp.float32(1e-24)))
                        ).astype(out_ref.dtype)


# ---------------------------------------------------------------------------
# Parameter prep & tiling heuristics
# ---------------------------------------------------------------------------
def prepare_params(wu, wv, wo, su, sv):
    """One-time parameter prep (at load time, not per forward call): fold su
    and sv*sqrt(dim) into the Wu/Wv rows, transpose the PyTorch (out, in)
    layout to (in, out), and cast to bf16 for the MXU."""
    dim = wu.shape[1]
    wu_s = (wu.astype(jnp.float32) * su.astype(jnp.float32)[:, None]).T
    wv_s = (wv.astype(jnp.float32)
            * (sv.astype(jnp.float32) * jnp.float32(math.sqrt(dim)))[:, None]).T
    wo_t = wo.astype(jnp.float32).T
    return (wu_s.astype(jnp.bfloat16),        # (dim, hidden)
            wv_s.astype(jnp.bfloat16),        # (dim, hidden)
            wo_t.astype(jnp.bfloat16))        # (hidden, dim)


def _round_up(x, m):
    return ((x + m - 1) // m) * m


def _vmem_ceiling():
    """Usable-VMEM ceiling (bytes) with headroom for Mosaic internal scratch:
    ~52 MiB on v7x (64 MiB/TC), ~100 MiB on v5e/v6e (128 MiB)."""
    phys = 64 << 20
    try:
        phys = int(pltpu.get_tpu_info().vmem_capacity_bytes)
    except Exception:
        pass
    return min(phys - (12 << 20), 100 << 20), phys


def _vmem_requirement(tm, th, dim, n_k, out_itemsize):
    """Estimated per-step VMEM footprint for a (tm, th) tiling."""
    w_buf = 1 if n_k == 1 else 2                      # Buffered(1) vs streamed
    w = w_buf * 3 * dim * th * 2                      # Wu/Wv/Wo chunks, bf16
    io = 2 * tm * dim * 2 + 2 * tm * dim * out_itemsize   # x / out, 2 buffers
    acc = tm * dim * 4                                # f32 accumulator scratch
    tmp = 3 * tm * th * 4                             # u, v, h f32 temporaries
    return w + io + acc + tmp


def _hidden_chunks(hidden):
    cands = [hidden]
    for c in (4096, 2048, 1024, 512, 256, 128):
        if c < hidden and hidden % c == 0:
            cands.append(c)
    return cands


def _choose_tiles(n, dim, hidden, out_itemsize, ceiling, tm_pref, th_pref):
    tm = max(16, _round_up(min(tm_pref, _round_up(n, 16)), 16))
    th_cands = [th_pref] if th_pref is not None else _hidden_chunks(hidden)
    while True:
        for th in th_cands:
            n_k = hidden // th
            if _vmem_requirement(tm, th, dim, n_k, out_itemsize) <= ceiling:
                return tm, th
        if tm <= 16:
            return tm, th_cands[-1]
        tm = max(16, (tm // 2) // 16 * 16)


# ---------------------------------------------------------------------------
# Wrapper
# ---------------------------------------------------------------------------
def normalized_mlp(x, wu_s, wv_s, wo_t, *, tm=None, th=None,
                   out_dtype=jnp.bfloat16):
    """x: (batch, seq, dim).  wu_s/wv_s: (dim, hidden) bf16 with scales folded
    in, wo_t: (hidden, dim) bf16 — from prepare_params()."""
    batch, seq, dim = x.shape
    hidden = wu_s.shape[1]
    assert wu_s.shape == (dim, hidden) and wv_s.shape == (dim, hidden)
    assert wo_t.shape == (hidden, dim)
    n = batch * seq

    out_itemsize = int(np.dtype(out_dtype).itemsize)
    ceiling, phys = _vmem_ceiling()
    if tm is None:
        tm = 256 if ceiling < (60 << 20) else 512      # v7x vs v5e/v6e default
    if th is not None:
        assert hidden % th == 0, "th must divide hidden"
    tm, th = _choose_tiles(n, dim, hidden, out_itemsize, ceiling, tm, th)
    n_k = hidden // th
    n_i = pl.cdiv(n, tm)

    x2 = x.reshape(n, dim)
    if x2.dtype != jnp.bfloat16:                       # skip cast if caller
        x2 = x2.astype(jnp.bfloat16)                   # already supplies bf16

    req = _vmem_requirement(tm, th, dim, n_k, out_itemsize)
    vmem_limit = int(min(max(int(req * 1.3), 32 << 20), phys))

    cost = pl.CostEstimate(
        flops=6 * n * dim * hidden,                    # three matmuls
        transcendentals=n * hidden,                    # exp in silu
        bytes_accessed=(n * dim * 2 + n * dim * out_itemsize
                        + 3 * dim * hidden * 2))

    def build(single_buffer_weights):
        wkw = ({"pipeline_mode": pl.Buffered(1)}
               if single_buffer_weights else {})
        return pl.pallas_call(
            _nmlp_kernel,
            out_shape=jax.ShapeDtypeStruct((n, dim), out_dtype),
            grid=(n_i, n_k),
            in_specs=[
                pl.BlockSpec((tm, dim), lambda i, k: (i, 0)),          # x rows
                pl.BlockSpec((dim, th), lambda i, k: (0, k), **wkw),   # Wu
                pl.BlockSpec((dim, th), lambda i, k: (0, k), **wkw),   # Wv
                pl.BlockSpec((th, dim), lambda i, k: (k, 0), **wkw),   # Wo
            ],
            out_specs=pl.BlockSpec((tm, dim), lambda i, k: (i, 0)),
            scratch_shapes=[pltpu.VMEM((tm, dim), jnp.float32)],
            compiler_params=pltpu.CompilerParams(
                dimension_semantics=("parallel", "arbitrary"),
                vmem_limit_bytes=vmem_limit),
            cost_estimate=cost,
        )

    if n_k == 1:
        # Constant-index weights: single-buffer them so the resident copy is
        # not doubled.  Fall back if this jax build rejects Buffered(1).
        try:
            out = build(True)(x2, wu_s, wv_s, wo_t)
        except Exception:
            out = build(False)(x2, wu_s, wv_s, wo_t)
    else:
        out = build(False)(x2, wu_s, wv_s, wo_t)

    return out.reshape(batch, seq, dim)


def normalized_mlp_ref(x, wu, wv, wo, su, sv):
    """Pure-JAX f32 reference mirroring the PyTorch forward."""
    dim = x.shape[-1]
    u = jnp.einsum("bsd,hd->bsh", x, wu) * su
    v = jnp.einsum("bsd,hd->bsh", x, wv) * sv * math.sqrt(dim)
    h = u * (v * jax.nn.sigmoid(v))
    o = jnp.einsum("bsh,dh->bsd", h, wo)
    norm = jnp.sqrt(jnp.sum(o * o, axis=-1, keepdims=True))
    return o / jnp.maximum(norm, 1e-12)


# ---------------------------------------------------------------------------
# Demo / correctness check
# ---------------------------------------------------------------------------
if __name__ == "__main__":
    def run_case(batch, seq, dim, hidden, *, tm=None, th=None):
        key = jax.random.PRNGKey(0)
        kx, ku, kv, ko = jax.random.split(key, 4)
        x = jax.random.normal(kx, (batch, seq, dim), dtype=jnp.float32)
        # nn.Linear default init scale — deterministic synthetic params.
        wu = jax.random.uniform(ku, (hidden, dim), jnp.float32,
                                -1.0 / math.sqrt(dim), 1.0 / math.sqrt(dim))
        wv = jax.random.uniform(kv, (hidden, dim), jnp.float32,
                                -1.0 / math.sqrt(dim), 1.0 / math.sqrt(dim))
        wo = jax.random.uniform(ko, (dim, hidden), jnp.float32,
                                -1.0 / math.sqrt(hidden), 1.0 / math.sqrt(hidden))
        su = jnp.ones((hidden,), jnp.float32)   # suscale=1.0, restore=1.0
        sv = jnp.ones((hidden,), jnp.float32)   # svscale=1.0, restore=1.0

        wu_s, wv_s, wo_t = prepare_params(wu, wv, wo, su, sv)
        out = normalized_mlp(x, wu_s, wv_s, wo_t, tm=tm, th=th)
        out = jax.block_until_ready(out).astype(jnp.float32)

        ref = normalized_mlp_ref(x, wu, wv, wo, su, sv)
        assert out.shape == (batch, seq, dim)
        # bf16 MXU operands / bf16 output / approx reciprocal -> ~1e-2 diffs.
        assert jnp.allclose(out, ref, atol=3e-2, rtol=3e-2), (
            f"mismatch vs reference (case {batch}x{seq}x{dim}x{hidden})")

    # Single-chunk path: n_k == 1, weights VMEM-resident & single-buffered.
    run_case(2, 8, 32, 64)
    # Hidden-tiled accumulator path + partial last row block (48 % 32 != 0).
    run_case(2, 24, 128, 256, tm=32, th=128)

    print("KERNEL_OK")
</pallas_src>

<mosaic_0001>
module attributes {stable_mosaic.version = 11 : i64} {
  func.func @_nmlp_kernel(%arg0: i32, %arg1: i32, %arg2: memref<16x32xbf16, #tpu.memory_space<vmem>>, %arg3: memref<32x64xbf16, #tpu.memory_space<vmem>>, %arg4: memref<32x64xbf16, #tpu.memory_space<vmem>>, %arg5: memref<64x32xbf16, #tpu.memory_space<vmem>>, %arg6: memref<16x32xbf16, #tpu.memory_space<vmem>>, %arg7: memref<16x32xf32, #tpu.memory_space<vmem>>) attributes {dimension_semantics = [#tpu.dimension_semantics<parallel>, #tpu.dimension_semantics<arbitrary>], iteration_bounds = array<i64: 1, 1>, scalar_prefetch = 0 : i64, scratch_operands = 1 : i64, tpu.core_type = #tpu.core_type<tc>, window_params = [{transform_indices = @transform_0, window_bounds = array<i64: 16, 32>}, {pipeline_mode = #tpu.pipeline_mode<synchronous>, transform_indices = @transform_1, window_bounds = array<i64: 32, 64>}, {pipeline_mode = #tpu.pipeline_mode<synchronous>, transform_indices = @transform_2, window_bounds = array<i64: 32, 64>}, {pipeline_mode = #tpu.pipeline_mode<synchronous>, transform_indices = @transform_3, window_bounds = array<i64: 64, 32>}, {transform_indices = @transform_4, window_bounds = array<i64: 16, 32>}]} {
    %c0_i32 = arith.constant 0 : i32
    %0 = arith.cmpi eq, %arg1, %c0_i32 : i32
    %1 = arith.extui %0 : i1 to i32
    %c0_i32_0 = arith.constant 0 : i32
    %2 = arith.cmpi ne, %1, %c0_i32_0 : i32
    scf.if %2 {
      %cst_18 = arith.constant 0.000000e+00 : f32
      %25 = vector.broadcast %cst_18 : f32 to vector<16x32xf32>
      %c0_19 = arith.constant 0 : index
      %c0_20 = arith.constant 0 : index
      %26 = vector.load %arg7[%c0_19, %c0_20] : memref<16x32xf32, #tpu.memory_space<vmem>>, vector<16x32xf32>
      tpu.vector_store %arg7[%c0_19, %c0_20], %25 {strides = array<i32>} : memref<16x32xf32, #tpu.memory_space<vmem>>, vector<16x32xf32>,
    } else {
    }
    %c0 = arith.constant 0 : index
    %c0_1 = arith.constant 0 : index
    %3 = vector.load %arg2[%c0, %c0_1] : memref<16x32xbf16, #tpu.memory_space<vmem>>, vector<16x32xbf16>
    %c0_2 = arith.constant 0 : index
    %c0_3 = arith.constant 0 : index
    %4 = vector.load %arg3[%c0_2, %c0_3] : memref<32x64xbf16, #tpu.memory_space<vmem>>, vector<32x64xbf16>
    %cst = arith.constant dense<0.000000e+00> : vector<16x64xf32>
    %5 = tpu.matmul %3, %4, %cst {dimension_numbers = #tpu.dot_dimension_numbers<[1], [0], [0], [1], [0, 0, 1, 1], [], []>} : vector<16x32xbf16>, vector<32x64xbf16>, vector<16x64xf32> -> vector<16x64xf32>
    %c0_4 = arith.constant 0 : index
    %c0_5 = arith.constant 0 : index
    %6 = vector.load %arg4[%c0_4, %c0_5] : memref<32x64xbf16, #tpu.memory_space<vmem>>, vector<32x64xbf16>
    %cst_6 = arith.constant dense<0.000000e+00> : vector<16x64xf32>
    %7 = tpu.matmul %3, %6, %cst_6 {dimension_numbers = #tpu.dot_dimension_numbers<[1], [0], [0], [1], [0, 0, 1, 1], [], []>} : vector<16x32xbf16>, vector<32x64xbf16>, vector<16x64xf32> -> vector<16x64xf32>
    %cst_7 = arith.constant 0.000000e+00 : f32
    %8 = vector.broadcast %cst_7 : f32 to vector<16x64xf32>
    %9 = arith.subf %8, %7 : vector<16x64xf32>
    %10 = math.exp %9 : vector<16x64xf32>
    %cst_8 = arith.constant 1.000000e+00 : f32
    %11 = vector.broadcast %cst_8 : f32 to vector<16x64xf32>
    %12 = arith.addf %11, %10 : vector<16x64xf32>
    %13 = tpu.reciprocal %12 {approx = true} : vector<16x64xf32> -> vector<16x64xf32>
    %14 = arith.mulf %7, %13 : vector<16x64xf32>
    %15 = arith.mulf %5, %14 : vector<16x64xf32>
    %c0_9 = arith.constant 0 : index
    %c0_10 = arith.constant 0 : index
    %16 = vector.load %arg7[%c0_9, %c0_10] : memref<16x32xf32, #tpu.memory_space<vmem>>, vector<16x32xf32>
    %17 = arith.truncf %15 : vector<16x64xf32> to vector<16x64xbf16>
    %c0_11 = arith.constant 0 : index
    %c0_12 = arith.constant 0 : index
    %18 = vector.load %arg5[%c0_11, %c0_12] : memref<64x32xbf16, #tpu.memory_space<vmem>>, vector<64x32xbf16>
    %cst_13 = arith.constant dense<0.000000e+00> : vector<16x32xf32>
    %19 = tpu.matmul %17, %18, %cst_13 {dimension_numbers = #tpu.dot_dimension_numbers<[1], [0], [0], [1], [0, 0, 1, 1], [], []>} : vector<16x64xbf16>, vector<64x32xbf16>, vector<16x32xf32> -> vector<16x32xf32>
    %20 = arith.addf %16, %19 : vector<16x32xf32>
    %c0_14 = arith.constant 0 : index
    %c0_15 = arith.constant 0 : index
    %21 = vector.load %arg7[%c0_14, %c0_15] : memref<16x32xf32, #tpu.memory_space<vmem>>, vector<16x32xf32>
    tpu.vector_store %arg7[%c0_14, %c0_15], %20 {strides = array<i32>} : memref<16x32xf32, #tpu.memory_space<vmem>>, vector<16x32xf32>,
    %c0_i32_16 = arith.constant 0 : i32
    %22 = arith.cmpi eq, %arg1, %c0_i32_16 : i32
    %23 = arith.extui %22 : i1 to i32
    %c0_i32_17 = arith.constant 0 : i32
    %24 = arith.cmpi ne, %23, %c0_i32_17 : i32
    scf.if %24 {
      %c0_18 = arith.constant 0 : index
      %c0_19 = arith.constant 0 : index
      %25 = vector.load %arg7[%c0_18, %c0_19] : memref<16x32xf32, #tpu.memory_space<vmem>>, vector<16x32xf32>
      %26 = arith.mulf %25, %25 : vector<16x32xf32>
      %cst_20 = arith.constant dense<0.000000e+00> : vector<16xf32>
      %27 = vector.multi_reduction <add>, %26, %cst_20 [1] : vector<16x32xf32> to vector<16xf32>
      %28 = vector.shape_cast %27 : vector<16xf32> to vector<16x1xf32>
      %cst_21 = arith.constant 1.000000e-24 : f32
      %29 = vector.broadcast %cst_21 : f32 to vector<16x1xf32>
      %30 = arith.maximumf %28, %29 : vector<16x1xf32>
      %31 = math.rsqrt %30 : vector<16x1xf32>
      %32 = vector.broadcast %31 : vector<16x1xf32> to vector<16x32xf32>
      %33 = arith.mulf %25, %32 : vector<16x32xf32>
      %34 = arith.truncf %33 : vector<16x32xf32> to vector<16x32xbf16>
      %c0_22 = arith.constant 0 : index
      %c0_23 = arith.constant 0 : index
      %35 = vector.load %arg6[%c0_22, %c0_23] : memref<16x32xbf16, #tpu.memory_space<vmem>>, vector<16x32xbf16>
      tpu.vector_store %arg6[%c0_22, %c0_23], %34 {strides = array<i32>} : memref<16x32xbf16, #tpu.memory_space<vmem>>, vector<16x32xbf16>,
    } else {
    }
    return
  }
  func.func @transform_0(%arg0: i32, %arg1: i32) -> (i32, i32) {
    %c0_i32 = arith.constant 0 : i32
    %c0_i32_0 = arith.constant 0 : i32
    return %arg0, %c0_i32 : i32, i32
  }
  func.func @transform_1(%arg0: i32, %arg1: i32) -> (i32, i32) {
    %c0_i32 = arith.constant 0 : i32
    %c0_i32_0 = arith.constant 0 : i32
    return %c0_i32, %arg1 : i32, i32
  }
  func.func @transform_2(%arg0: i32, %arg1: i32) -> (i32, i32) {
    %c0_i32 = arith.constant 0 : i32
    %c0_i32_0 = arith.constant 0 : i32
    return %c0_i32, %arg1 : i32, i32
  }
  func.func @transform_3(%arg0: i32, %arg1: i32) -> (i32, i32) {
    %c0_i32 = arith.constant 0 : i32
    %c0_i32_0 = arith.constant 0 : i32
    return %arg1, %c0_i32 : i32, i32
  }
  func.func @transform_4(%arg0: i32, %arg1: i32) -> (i32, i32) {
    %c0_i32 = arith.constant 0 : i32
    %c0_i32_0 = arith.constant 0 : i32
    return %arg0, %c0_i32 : i32, i32
  }
}

module attributes {stable_mosaic.version = 11 : i64} {
  func.func @_nmlp_kernel(%arg0: i32, %arg1: i32, %arg2: memref<16x32xbf16, #tpu.memory_space<vmem>>, %arg3: memref<32x64xbf16, #tpu.memory_space<vmem>>, %arg4: memref<32x64xbf16, #tpu.memory_space<vmem>>, %arg5: memref<64x32xbf16, #tpu.memory_space<vmem>>, %arg6: memref<16x32xbf16, #tpu.memory_space<vmem>>, %arg7: memref<16x32xf32, #tpu.memory_space<vmem>>) attributes {dimension_semantics = [#tpu.dimension_semantics<parallel>, #tpu.dimension_semantics<arbitrary>], iteration_bounds = array<i64: 1, 1>, scalar_prefetch = 0 : i64, scratch_operands = 1 : i64, tpu.core_type = #tpu.core_type<tc>, window_params = [{transform_indices = @transform_0, window_bounds = array<i64: 16, 32>}, {transform_indices = @transform_1, window_bounds = array<i64: 32, 64>}, {transform_indices = @transform_2, window_bounds = array<i64: 32, 64>}, {transform_indices = @transform_3, window_bounds = array<i64: 64, 32>}, {transform_indices = @transform_4, window_bounds = array<i64: 16, 32>}]} {
    %c0_i32 = arith.constant 0 : i32
    %0 = arith.cmpi eq, %arg1, %c0_i32 : i32
    %1 = arith.extui %0 : i1 to i32
    %c0_i32_0 = arith.constant 0 : i32
    %2 = arith.cmpi ne, %1, %c0_i32_0 : i32
    scf.if %2 {
      %cst_18 = arith.constant 0.000000e+00 : f32
      %25 = vector.broadcast %cst_18 : f32 to vector<16x32xf32>
      %c0_19 = arith.constant 0 : index
      %c0_20 = arith.constant 0 : index
      %26 = vector.load %arg7[%c0_19, %c0_20] : memref<16x32xf32, #tpu.memory_space<vmem>>, vector<16x32xf32>
      tpu.vector_store %arg7[%c0_19, %c0_20], %25 {strides = array<i32>} : memref<16x32xf32, #tpu.memory_space<vmem>>, vector<16x32xf32>,
    } else {
    }
    %c0 = arith.constant 0 : index
    %c0_1 = arith.constant 0 : index
    %3 = vector.load %arg2[%c0, %c0_1] : memref<16x32xbf16, #tpu.memory_space<vmem>>, vector<16x32xbf16>
    %c0_2 = arith.constant 0 : index
    %c0_3 = arith.constant 0 : index
    %4 = vector.load %arg3[%c0_2, %c0_3] : memref<32x64xbf16, #tpu.memory_space<vmem>>, vector<32x64xbf16>
    %cst = arith.constant dense<0.000000e+00> : vector<16x64xf32>
    %5 = tpu.matmul %3, %4, %cst {dimension_numbers = #tpu.dot_dimension_numbers<[1], [0], [0], [1], [0, 0, 1, 1], [], []>} : vector<16x32xbf16>, vector<32x64xbf16>, vector<16x64xf32> -> vector<16x64xf32>
    %c0_4 = arith.constant 0 : index
    %c0_5 = arith.constant 0 : index
    %6 = vector.load %arg4[%c0_4, %c0_5] : memref<32x64xbf16, #tpu.memory_space<vmem>>, vector<32x64xbf16>
    %cst_6 = arith.constant dense<0.000000e+00> : vector<16x64xf32>
    %7 = tpu.matmul %3, %6, %cst_6 {dimension_numbers = #tpu.dot_dimension_numbers<[1], [0], [0], [1], [0, 0, 1, 1], [], []>} : vector<16x32xbf16>, vector<32x64xbf16>, vector<16x64xf32> -> vector<16x64xf32>
    %cst_7 = arith.constant 0.000000e+00 : f32
    %8 = vector.broadcast %cst_7 : f32 to vector<16x64xf32>
    %9 = arith.subf %8, %7 : vector<16x64xf32>
    %10 = math.exp %9 : vector<16x64xf32>
    %cst_8 = arith.constant 1.000000e+00 : f32
    %11 = vector.broadcast %cst_8 : f32 to vector<16x64xf32>
    %12 = arith.addf %11, %10 : vector<16x64xf32>
    %13 = tpu.reciprocal %12 {approx = true} : vector<16x64xf32> -> vector<16x64xf32>
    %14 = arith.mulf %7, %13 : vector<16x64xf32>
    %15 = arith.mulf %5, %14 : vector<16x64xf32>
    %c0_9 = arith.constant 0 : index
    %c0_10 = arith.constant 0 : index
    %16 = vector.load %arg7[%c0_9, %c0_10] : memref<16x32xf32, #tpu.memory_space<vmem>>, vector<16x32xf32>
    %17 = arith.truncf %15 : vector<16x64xf32> to vector<16x64xbf16>
    %c0_11 = arith.constant 0 : index
    %c0_12 = arith.constant 0 : index
    %18 = vector.load %arg5[%c0_11, %c0_12] : memref<64x32xbf16, #tpu.memory_space<vmem>>, vector<64x32xbf16>
    %cst_13 = arith.constant dense<0.000000e+00> : vector<16x32xf32>
    %19 = tpu.matmul %17, %18, %cst_13 {dimension_numbers = #tpu.dot_dimension_numbers<[1], [0], [0], [1], [0, 0, 1, 1], [], []>} : vector<16x64xbf16>, vector<64x32xbf16>, vector<16x32xf32> -> vector<16x32xf32>
    %20 = arith.addf %16, %19 : vector<16x32xf32>
    %c0_14 = arith.constant 0 : index
    %c0_15 = arith.constant 0 : index
    %21 = vector.load %arg7[%c0_14, %c0_15] : memref<16x32xf32, #tpu.memory_space<vmem>>, vector<16x32xf32>
    tpu.vector_store %arg7[%c0_14, %c0_15], %20 {strides = array<i32>} : memref<16x32xf32, #tpu.memory_space<vmem>>, vector<16x32xf32>,
    %c0_i32_16 = arith.constant 0 : i32
    %22 = arith.cmpi eq, %arg1, %c0_i32_16 : i32
    %23 = arith.extui %22 : i1 to i32
    %c0_i32_17 = arith.constant 0 : i32
    %24 = arith.cmpi ne, %23, %c0_i32_17 : i32
    scf.if %24 {
      %c0_18 = arith.constant 0 : index
      %c0_19 = arith.constant 0 : index
      %25 = vector.load %arg7[%c0_18, %c0_19] : memref<16x32xf32, #tpu.memory_space<vmem>>, vector<16x32xf32>
      %26 = arith.mulf %25, %25 : vector<16x32xf32>
      %cst_20 = arith.constant dense<0.000000e+00> : vector<16xf32>
      %27 = vector.multi_reduction <add>, %26, %cst_20 [1] : vector<16x32xf32> to vector<16xf32>
      %28 = vector.shape_cast %27 : vector<16xf32> to vector<16x1xf32>
      %cst_21 = arith.constant 1.000000e-24 : f32
      %29 = vector.broadcast %cst_21 : f32 to vector<16x1xf32>
      %30 = arith.maximumf %28, %29 : vector<16x1xf32>
      %31 = math.rsqrt %30 : vector<16x1xf32>
      %32 = vector.broadcast %31 : vector<16x1xf32> to vector<16x32xf32>
      %33 = arith.mulf %25, %32 : vector<16x32xf32>
      %34 = arith.truncf %33 : vector<16x32xf32> to vector<16x32xbf16>
      %c0_22 = arith.constant 0 : index
      %c0_23 = arith.constant 0 : index
      %35 = vector.load %arg6[%c0_22, %c0_23] : memref<16x32xbf16, #tpu.memory_space<vmem>>, vector<16x32xbf16>
      tpu.vector_store %arg6[%c0_22, %c0_23], %34 {strides = array<i32>} : memref<16x32xbf16, #tpu.memory_space<vmem>>, vector<16x32xbf16>,
    } else {
    }
    return
  }
  func.func @transform_0(%arg0: i32, %arg1: i32) -> (i32, i32) {
    %c0_i32 = arith.constant 0 : i32
    %c0_i32_0 = arith.constant 0 : i32
    return %arg0, %c0_i32 : i32, i32
  }
  func.func @transform_1(%arg0: i32, %arg1: i32) -> (i32, i32) {
    %c0_i32 = arith.constant 0 : i32
    %c0_i32_0 = arith.constant 0 : i32
    return %c0_i32, %arg1 : i32, i32
  }
  func.func @transform_2(%arg0: i32, %arg1: i32) -> (i32, i32) {
    %c0_i32 = arith.constant 0 : i32
    %c0_i32_0 = arith.constant 0 : i32
    return %c0_i32, %arg1 : i32, i32
  }
  func.func @transform_3(%arg0: i32, %arg1: i32) -> (i32, i32) {
    %c0_i32 = arith.constant 0 : i32
    %c0_i32_0 = arith.constant 0 : i32
    return %arg1, %c0_i32 : i32, i32
  }
  func.func @transform_4(%arg0: i32, %arg1: i32) -> (i32, i32) {
    %c0_i32 = arith.constant 0 : i32
    %c0_i32_0 = arith.constant 0 : i32
    return %arg0, %c0_i32 : i32, i32
  }
}

</mosaic_0001>

<llo_original>
// kernel: tpu_custom_call.1
$region0: #{tpu_custom_call.1}
  #allocation0 [shape = 'u32[]', space=smem, size = 0x4, offset = 0x4, fixed_abs, tag = 'smem constant byte address 0x4 - core index']
  #allocation1 [shape = 'u32[72,128]{1,0:T(1,128)}', space=vmem, size = 0x9000, scoped, tag = 'internal scratch']
  #allocation2 [shape = 'f32[16,32]{1,0:T(8,128)}', space=vmem, size = 0x2000, scoped, tag = 'scratch operand']
  %s0 = inlined_call_operand.vmem [shape: bf16[16,32], index: 0, kind: input, shape index: {}]
  %s1 = inlined_call_operand.vmem [shape: bf16[32,64], index: 1, kind: input, shape index: {}]
  %s2 = inlined_call_operand.vmem [shape: bf16[32,64], index: 2, kind: input, shape index: {}]
  %s3 = inlined_call_operand.vmem [shape: bf16[64,32], index: 3, kind: input, shape index: {}]
  %s4 = inlined_call_operand.hbm [shape: bf16[16,32], index: 4, kind: output, shape index: {}]
  %s5 = sld [smem:[#allocation0]]
  $region34: #{tpu_custom_call.1} parent=0
    _
  %s7 = ssub.s32 1, %s5
  %s8 = scalar_select 0, %s7, %s5
  $region1: #{tpu_custom_call.1} parent=0
    #allocation3 [shape = 'u8[4096]{0}', space=vmem, size = 0x1000, scoped, tag = 'output window, operand 0, single buffered']
    #allocation4 [shape = 's32[1]{0}', space=sflag, size = 0x4, scoped, tag = 'scoped memory for tpu_custom_call.1']
    %9 = vsyncpa [#allocation4], 0
    // Predicated region
    $region2: #{tpu_custom_call.1} parent=1 // pred_check
      _
    $region3: #{tpu_custom_call.1} parent=1 // pred_check_branch
      %11 = sbr.rel (0) target = $region5
    $region4: #{tpu_custom_call.1} parent=1 // pred_region
      _
    $region5: #{tpu_custom_call.1} parent=1 // pred_fallthru
      _
    // Predicated region
    $region6: #{tpu_custom_call.1} parent=1 // pred_check
      _
    $region7: #{tpu_custom_call.1} parent=1 // pred_check_branch
      %13 = sbr.rel (0) target = $region9
    $region8: #{tpu_custom_call.1} parent=1 // pred_region
      _
    $region9: #{tpu_custom_call.1} parent=1 // pred_fallthru
      _
    // Predicated region
    $region10: #{tpu_custom_call.1} parent=1 // pred_check
      _
    $region11: #{tpu_custom_call.1} parent=1 // pred_check_branch
      %15 = sbr.rel (0) target = $region13
    $region12: #{tpu_custom_call.1} parent=1 // pred_region
      _
    $region13: #{tpu_custom_call.1} parent=1 // pred_fallthru
      _
    // Predicated region
    $region14: #{tpu_custom_call.1} parent=1 // pred_check
      _
    $region15: #{tpu_custom_call.1} parent=1 // pred_check_branch
      %17 = sbr.rel (0) target = $region17
    $region16: #{tpu_custom_call.1} parent=1 // pred_region
      _
    $region17: #{tpu_custom_call.1} parent=1 // pred_fallthru
      _
    %p19 = scmp.eq.s32.totalorder 0, 0
    // Predicated region
    $region18: #{tpu_custom_call.1} parent=1 // pred_check
      %p20 = pneg %p19
    $region19: #{tpu_custom_call.1} parent=1 // pred_check_branch
      %22 = sbr.rel (%p20) target = $region21
    $region20: #{tpu_custom_call.1} parent=1 // pred_region
      %vm23 = vcmask 261120
      %24 = vst.msk [vmem:[#allocation2] sm:$0xff] %vm23, 0.0
      %25 = vst.msk [vmem:[#allocation2 + $0x8] sm:$0xff] %vm23, 0.0
    $region21: #{tpu_custom_call.1} parent=1 // pred_fallthru
      _
    %v26 = vld [vmem:[%s0] sm:$0xf]
    %v27 = vld [vmem:[%s0 + $0x4] sm:$0xf]
    %v28 = vld [vmem:[%s1] sm:$0xf]
    %v29 = vld [vmem:[%s1 + $0x4] sm:$0xf]
    %v30 = vld [vmem:[%s1 + $0x8] sm:$0xf]
    %v31 = vld [vmem:[%s1 + $0xc] sm:$0xf]
    %v34 = vunpack.c.l.b16 %v26
    %v35 = vunpack.c.l.b16 %v27
    %v36 = vpack.c.b16 %v35, %v34
    %v41 = vunpack.c.l.b16 %v28
    %v42 = vunpack.c.l.b16 %v29
    %v43 = vunpack.c.l.b16 %v30
    %v44 = vunpack.c.l.b16 %v31
    %v45 = vpack.c.b16 %v42, %v41
    %v46 = vpack.c.b16 %v44, %v43
    %vm49 = vcmask 261120
    %v51 = vsel %vm49, %v36, 0
    %53 = vmatpush.bf16.msra.mxu0 0
    %54 = vmatpush.bf16.msra.mxu0 0
    %55 = vmatpush.bf16.msra.mxu0 0
    %56 = vmatpush.bf16.msra.mxu0 0
    %57 = vmatpush.bf16.msra.mxu0 0
    %58 = vmatpush.bf16.msra.mxu0 0
    %59 = vmatpush.bf16.msra.mxu0 %v46
    %60 = vmatpush.bf16.msra.mxu0 %v45
    %61 = vmatmul.bf16.gmra.mxu0 %v51
    %v62 = vpop.f32.mrf.mxu0
    %v63 = vadd.f32 0.0, %v62
    %v64 = vpop.f32.mrf.mxu0
    %v65 = vadd.f32 0.0, %v64
    %66 = vdwg.mxu0
    %v67 = vld [vmem:[%s2] sm:$0xf]
    %v68 = vld [vmem:[%s2 + $0x4] sm:$0xf]
    %v69 = vld [vmem:[%s2 + $0x8] sm:$0xf]
    %v70 = vld [vmem:[%s2 + $0xc] sm:$0xf]
    %v75 = vunpack.c.l.b16 %v67
    %v76 = vunpack.c.l.b16 %v68
    %v77 = vunpack.c.l.b16 %v69
    %v78 = vunpack.c.l.b16 %v70
    %v79 = vpack.c.b16 %v76, %v75
    %v80 = vpack.c.b16 %v78, %v77
    %83 = vmatpush.bf16.msra.mxu0 0
    %84 = vmatpush.bf16.msra.mxu0 0
    %85 = vmatpush.bf16.msra.mxu0 0
    %86 = vmatpush.bf16.msra.mxu0 0
    %87 = vmatpush.bf16.msra.mxu0 0
    %88 = vmatpush.bf16.msra.mxu0 0
    %89 = vmatpush.bf16.msra.mxu0 %v80
    %90 = vmatpush.bf16.msra.mxu0 %v79
    %91 = vmatmul.bf16.gmra.mxu0 %v51
    %v92 = vpop.f32.mrf.mxu0
    %v93 = vadd.f32 0.0, %v92
    %v94 = vpop.f32.mrf.mxu0
    %v95 = vadd.f32 0.0, %v94
    %96 = vdwg.mxu0
    %v97 = vsub.f32 0.0, %v93
    %v98 = vsub.f32 0.0, %v95
    %v99 = vmul.f32 %v97, 1.442695
    %v100 = vpow.pop %v99
    %v101 = vmul.f32 %v98, 1.442695
    %v102 = vpow.pop %v101
    %v103 = vadd.f32 %v100, 1.0
    %v104 = vadd.f32 %v102, 1.0
    %v105 = vrcp.pop %v103
    %v106 = vrcp.pop %v104
    %v107 = vmul.f32 %v93, %v105
    %v108 = vmul.f32 %v95, %v106
    %v109 = vmul.f32 %v63, %v107
    %v110 = vmul.f32 %v65, %v108
    %v111 = vld [vmem:[#allocation2] sm:$0xff]
    %v112 = vld [vmem:[#allocation2 + $0x8] sm:$0xff]
    %v113 = vpack.c.bf16 %v110, %v109
    %v114 = vld [vmem:[%s3] sm:$0xf]
    %v115 = vld [vmem:[%s3 + $0x4] sm:$0xf]
    %v116 = vld [vmem:[%s3 + $0x8] sm:$0xf]
    %v117 = vld [vmem:[%s3 + $0xc] sm:$0xf]
    %v118 = vld [vmem:[%s3 + $0x10] sm:$0xf]
    %v119 = vld [vmem:[%s3 + $0x14] sm:$0xf]
    %v120 = vld [vmem:[%s3 + $0x18] sm:$0xf]
    %v121 = vld [vmem:[%s3 + $0x1c] sm:$0xf]
    %v130 = vunpack.c.l.b16 %v114
    %v131 = vunpack.c.l.b16 %v115
    %v132 = vunpack.c.l.b16 %v116
    %v133 = vunpack.c.l.b16 %v117
    %v134 = vunpack.c.l.b16 %v118
    %v135 = vunpack.c.l.b16 %v119
    %v136 = vunpack.c.l.b16 %v120
    %v137 = vunpack.c.l.b16 %v121
    %v138 = vpack.c.b16 %v131, %v130
    %v139 = vpack.c.b16 %v133, %v132
    %v140 = vpack.c.b16 %v135, %v134
    %v141 = vpack.c.b16 %v137, %v136
    %vm146 = vcmask 523264
    %v148 = vsel %vm146, %v113, 0
    %150 = vmatpush.bf16.msra.mxu0 0
    %151 = vmatpush.bf16.msra.mxu0 0
    %152 = vmatpush.bf16.msra.mxu0 0
    %153 = vmatpush.bf16.msra.mxu0 0
    %154 = vmatpush.bf16.msra.mxu0 %v141
    %155 = vmatpush.bf16.msra.mxu0 %v140
    %156 = vmatpush.bf16.msra.mxu0 %v139
    %157 = vmatpush.bf16.msra.mxu0 %v138
    %158 = vmatmul.bf16.gmra.mxu0 %v148
    %v159 = vpop.f32.mrf.mxu0
    %v160 = vadd.f32 0.0, %v159
    %v161 = vpop.f32.mrf.mxu0
    %v162 = vadd.f32 0.0, %v161
    %163 = vdwg.mxu0
    %v164 = vadd.f32 %v111, %v160
    %v165 = vadd.f32 %v112, %v162
    %166 = vst.msk [vmem:[#allocation2] sm:$0xff] %vm49, %v164
    %167 = vst.msk [vmem:[#allocation2 + $0x8] sm:$0xff] %vm49, %v165
    // Predicated region
    $region22: #{tpu_custom_call.1} parent=1 // pred_check
      %p168 = pneg %p19
    $region23: #{tpu_custom_call.1} parent=1 // pred_check_branch
      %170 = sbr.rel (%p168) target = $region25
    $region24: #{tpu_custom_call.1} parent=1 // pred_region
      %v171 = vld [vmem:[#allocation2] sm:$0xff]
      %v172 = vld [vmem:[#allocation2 + $0x8] sm:$0xff]
      %v173 = vmul.f32 %v171, %v171
      %v174 = vmul.f32 %v172, %v172
      %v175 = vsel %vm49, %v173, 0.0
      %176 = vadd.xlane.f32.xlu0 %v175
      %v177 = vpop.xlane.xlu0 %176
      %v178 = vsel %vm49, %v174, 0.0
      %179 = vadd.xlane.f32.xlu0 %v178
      %v180 = vpop.xlane.xlu0 %179
      %v181 = vmax.f32 %v177, 1e-24
      %v182 = vmax.f32 %v180, 1e-24
      %v183 = vrsqrt.pop %v181
      %v184 = vmul.f32 %v183, %v181
      %v185 = vmul.f32 %v184, %v183
      %v186 = vmul.f32 0.5, %v185
      %v187 = vsub.f32 1.5, %v186
      %v188 = vmul.f32 %v183, %v187
      %vm189 = vweird.f32 %v181
      %vm190 = vweird.f32 %v183
      %vm191 = vmor %vm189, %vm190
      %v192 = vsel %vm191, %v183, %v188
      %v193 = vrsqrt.pop %v182
      %v194 = vmul.f32 %v193, %v182
      %v195 = vmul.f32 %v194, %v193
      %v196 = vmul.f32 0.5, %v195
      %v197 = vsub.f32 1.5, %v196
      %v198 = vmul.f32 %v193, %v197
      %vm199 = vweird.f32 %v182
      %vm200 = vweird.f32 %v193
      %vm201 = vmor %vm199, %vm200
      %v202 = vsel %vm201, %v193, %v198
      %v203 = vmul.f32 %v171, %v192
      %v204 = vmul.f32 %v172, %v202
      %v205 = vpack.c.bf16 %v203, %v203
      %v206 = vpack.c.bf16 %v204, %v204
      %vm207 = vcmask 257024
      %208 = vst.msk [vmem:[#allocation3] sm:$0xf] %vm207, %v205
      %209 = vst.msk [vmem:[#allocation3 + $0x4] sm:$0xf] %vm207, %v206
    $region25: #{tpu_custom_call.1} parent=1 // pred_fallthru
      _
    // Predicated region
    $region26: #{tpu_custom_call.1} parent=1 // pred_check
      _
    $region27: #{tpu_custom_call.1} parent=1 // pred_check_branch
      %211 = sbr.rel (0) target = $region29
    $region28: #{tpu_custom_call.1} parent=1 // pred_region
      %213 = vsyncadd [#allocation4], 0
      %s214 = sshll.u32 [#allocation3], 4
      %s215 = int_to_ptr.vmem [resolvable:$true] %s214
      %s216 = sshll.u32 %s4, 4
      %s217 = int_to_ptr.hbm [resolvable:$true] %s216
      %222 = dma.vmem_to_hbm [thread:$0]  %s215, 128, %s217, [#allocation4], 64, 64, 4
    $region29: #{tpu_custom_call.1} parent=1 // pred_fallthru
      _
    // Predicated region
    $region30: #{tpu_custom_call.1} parent=1 // pred_check
      _
    $region31: #{tpu_custom_call.1} parent=1 // pred_check_branch
      %224 = sbr.rel (0) target = $region33
    $region32: #{tpu_custom_call.1} parent=1 // pred_region
      %226 = dma.done [#allocation4], 128
    $region33: #{tpu_custom_call.1} parent=1 // pred_fallthru
      _
    %227 = vsyncpa [#allocation4], 1

// kernel: tpu_custom_call.1
$region0: #{tpu_custom_call.1}
  #allocation0 [shape = 'u32[]', space=smem, size = 0x4, offset = 0x4, fixed_abs, tag = 'smem constant byte address 0x4 - core index']
  #allocation1 [shape = 'u32[72,128]{1,0:T(1,128)}', space=vmem, size = 0x9000, scoped, tag = 'internal scratch']
  #allocation2 [shape = 'f32[16,32]{1,0:T(8,128)}', space=vmem, size = 0x2000, scoped, tag = 'scratch operand']
  %s0 = inlined_call_operand.vmem [shape: bf16[16,32], index: 0, kind: input, shape index: {}]
  %s1 = inlined_call_operand.vmem [shape: bf16[32,64], index: 1, kind: input, shape index: {}]
  %s2 = inlined_call_operand.vmem [shape: bf16[32,64], index: 2, kind: input, shape index: {}]
  %s3 = inlined_call_operand.vmem [shape: bf16[64,32], index: 3, kind: input, shape index: {}]
  %s4 = inlined_call_operand.hbm [shape: bf16[16,32], index: 4, kind: output, shape index: {}]
  %s5 = sld [smem:[#allocation0]]
  $region34: #{tpu_custom_call.1} parent=0
    _
  %s7 = ssub.s32 1, %s5
  %s8 = scalar_select 0, %s7, %s5
  $region1: #{tpu_custom_call.1} parent=0
    #allocation3 [shape = 'u8[4096]{0}', space=vmem, size = 0x1000, scoped, tag = 'output window, operand 0, single buffered']
    #allocation4 [shape = 's32[1]{0}', space=sflag, size = 0x4, scoped, tag = 'scoped memory for tpu_custom_call.1']
    %9 = vsyncpa [#allocation4], 0
    // Predicated region
    $region2: #{tpu_custom_call.1} parent=1 // pred_check
      _
    $region3: #{tpu_custom_call.1} parent=1 // pred_check_branch
      %11 = sbr.rel (0) target = $region5
    $region4: #{tpu_custom_call.1} parent=1 // pred_region
      _
    $region5: #{tpu_custom_call.1} parent=1 // pred_fallthru
      _
    // Predicated region
    $region6: #{tpu_custom_call.1} parent=1 // pred_check
      _
    $region7: #{tpu_custom_call.1} parent=1 // pred_check_branch
      %13 = sbr.rel (0) target = $region9
    $region8: #{tpu_custom_call.1} parent=1 // pred_region
      _
    $region9: #{tpu_custom_call.1} parent=1 // pred_fallthru
      _
    // Predicated region
    $region10: #{tpu_custom_call.1} parent=1 // pred_check
      _
    $region11: #{tpu_custom_call.1} parent=1 // pred_check_branch
      %15 = sbr.rel (0) target = $region13
    $region12: #{tpu_custom_call.1} parent=1 // pred_region
      _
    $region13: #{tpu_custom_call.1} parent=1 // pred_fallthru
      _
    // Predicated region
    $region14: #{tpu_custom_call.1} parent=1 // pred_check
      _
    $region15: #{tpu_custom_call.1} parent=1 // pred_check_branch
      %17 = sbr.rel (0) target = $region17
    $region16: #{tpu_custom_call.1} parent=1 // pred_region
      _
    $region17: #{tpu_custom_call.1} parent=1 // pred_fallthru
      _
    %p19 = scmp.eq.s32.totalorder 0, 0
    // Predicated region
    $region18: #{tpu_custom_call.1} parent=1 // pred_check
      %p20 = pneg %p19
    $region19: #{tpu_custom_call.1} parent=1 // pred_check_branch
      %22 = sbr.rel (%p20) target = $region21
    $region20: #{tpu_custom_call.1} parent=1 // pred_region
      %vm23 = vcmask 261120
      %24 = vst.msk [vmem:[#allocation2] sm:$0xff] %vm23, 0.0
      %25 = vst.msk [vmem:[#allocation2 + $0x8] sm:$0xff] %vm23, 0.0
    $region21: #{tpu_custom_call.1} parent=1 // pred_fallthru
      _
    %v26 = vld [vmem:[%s0] sm:$0xf]
    %v27 = vld [vmem:[%s0 + $0x4] sm:$0xf]
    %v28 = vld [vmem:[%s1] sm:$0xf]
    %v29 = vld [vmem:[%s1 + $0x4] sm:$0xf]
    %v30 = vld [vmem:[%s1 + $0x8] sm:$0xf]
    %v31 = vld [vmem:[%s1 + $0xc] sm:$0xf]
    %v34 = vunpack.c.l.b16 %v26
    %v35 = vunpack.c.l.b16 %v27
    %v36 = vpack.c.b16 %v35, %v34
    %v41 = vunpack.c.l.b16 %v28
    %v42 = vunpack.c.l.b16 %v29
    %v43 = vunpack.c.l.b16 %v30
    %v44 = vunpack.c.l.b16 %v31
    %v45 = vpack.c.b16 %v42, %v41
    %v46 = vpack.c.b16 %v44, %v43
    %vm49 = vcmask 261120
    %v51 = vsel %vm49, %v36, 0
    %53 = vmatpush.bf16.msra.mxu0 0
    %54 = vmatpush.bf16.msra.mxu0 0
    %55 = vmatpush.bf16.msra.mxu0 0
    %56 = vmatpush.bf16.msra.mxu0 0
    %57 = vmatpush.bf16.msra.mxu0 0
    %58 = vmatpush.bf16.msra.mxu0 0
    %59 = vmatpush.bf16.msra.mxu0 %v46
    %60 = vmatpush.bf16.msra.mxu0 %v45
    %61 = vmatmul.bf16.gmra.mxu0 %v51
    %v62 = vpop.f32.mrf.mxu0
    %v63 = vadd.f32 0.0, %v62
    %v64 = vpop.f32.mrf.mxu0
    %v65 = vadd.f32 0.0, %v64
    %66 = vdwg.mxu0
    %v67 = vld [vmem:[%s2] sm:$0xf]
    %v68 = vld [vmem:[%s2 + $0x4] sm:$0xf]
    %v69 = vld [vmem:[%s2 + $0x8] sm:$0xf]
    %v70 = vld [vmem:[%s2 + $0xc] sm:$0xf]
    %v75 = vunpack.c.l.b16 %v67
    %v76 = vunpack.c.l.b16 %v68
    %v77 = vunpack.c.l.b16 %v69
    %v78 = vunpack.c.l.b16 %v70
    %v79 = vpack.c.b16 %v76, %v75
    %v80 = vpack.c.b16 %v78, %v77
    %83 = vmatpush.bf16.msra.mxu0 0
    %84 = vmatpush.bf16.msra.mxu0 0
    %85 = vmatpush.bf16.msra.mxu0 0
    %86 = vmatpush.bf16.msra.mxu0 0
    %87 = vmatpush.bf16.msra.mxu0 0
    %88 = vmatpush.bf16.msra.mxu0 0
    %89 = vmatpush.bf16.msra.mxu0 %v80
    %90 = vmatpush.bf16.msra.mxu0 %v79
    %91 = vmatmul.bf16.gmra.mxu0 %v51
    %v92 = vpop.f32.mrf.mxu0
    %v93 = vadd.f32 0.0, %v92
    %v94 = vpop.f32.mrf.mxu0
    %v95 = vadd.f32 0.0, %v94
    %96 = vdwg.mxu0
    %v97 = vsub.f32 0.0, %v93
    %v98 = vsub.f32 0.0, %v95
    %v99 = vmul.f32 %v97, 1.442695
    %v100 = vpow.pop %v99
    %v101 = vmul.f32 %v98, 1.442695
    %v102 = vpow.pop %v101
    %v103 = vadd.f32 %v100, 1.0
    %v104 = vadd.f32 %v102, 1.0
    %v105 = vrcp.pop %v103
    %v106 = vrcp.pop %v104
    %v107 = vmul.f32 %v93, %v105
    %v108 = vmul.f32 %v95, %v106
    %v109 = vmul.f32 %v63, %v107
    %v110 = vmul.f32 %v65, %v108
    %v111 = vld [vmem:[#allocation2] sm:$0xff]
    %v112 = vld [vmem:[#allocation2 + $0x8] sm:$0xff]
    %v113 = vpack.c.bf16 %v110, %v109
    %v114 = vld [vmem:[%s3] sm:$0xf]
    %v115 = vld [vmem:[%s3 + $0x4] sm:$0xf]
    %v116 = vld [vmem:[%s3 + $0x8] sm:$0xf]
    %v117 = vld [vmem:[%s3 + $0xc] sm:$0xf]
    %v118 = vld [vmem:[%s3 + $0x10] sm:$0xf]
    %v119 = vld [vmem:[%s3 + $0x14] sm:$0xf]
    %v120 = vld [vmem:[%s3 + $0x18] sm:$0xf]
    %v121 = vld [vmem:[%s3 + $0x1c] sm:$0xf]
    %v130 = vunpack.c.l.b16 %v114
    %v131 = vunpack.c.l.b16 %v115
    %v132 = vunpack.c.l.b16 %v116
    %v133 = vunpack.c.l.b16 %v117
    %v134 = vunpack.c.l.b16 %v118
    %v135 = vunpack.c.l.b16 %v119
    %v136 = vunpack.c.l.b16 %v120
    %v137 = vunpack.c.l.b16 %v121
    %v138 = vpack.c.b16 %v131, %v130
    %v139 = vpack.c.b16 %v133, %v132
    %v140 = vpack.c.b16 %v135, %v134
    %v141 = vpack.c.b16 %v137, %v136
    %vm146 = vcmask 523264
    %v148 = vsel %vm146, %v113, 0
    %150 = vmatpush.bf16.msra.mxu0 0
    %151 = vmatpush.bf16.msra.mxu0 0
    %152 = vmatpush.bf16.msra.mxu0 0
    %153 = vmatpush.bf16.msra.mxu0 0
    %154 = vmatpush.bf16.msra.mxu0 %v141
    %155 = vmatpush.bf16.msra.mxu0 %v140
    %156 = vmatpush.bf16.msra.mxu0 %v139
    %157 = vmatpush.bf16.msra.mxu0 %v138
    %158 = vmatmul.bf16.gmra.mxu0 %v148
    %v159 = vpop.f32.mrf.mxu0
    %v160 = vadd.f32 0.0, %v159
    %v161 = vpop.f32.mrf.mxu0
    %v162 = vadd.f32 0.0, %v161
    %163 = vdwg.mxu0
    %v164 = vadd.f32 %v111, %v160
    %v165 = vadd.f32 %v112, %v162
    %166 = vst.msk [vmem:[#allocation2] sm:$0xff] %vm49, %v164
    %167 = vst.msk [vmem:[#allocation2 + $0x8] sm:$0xff] %vm49, %v165
    // Predicated region
    $region22: #{tpu_custom_call.1} parent=1 // pred_check
      %p168 = pneg %p19
    $region23: #{tpu_custom_call.1} parent=1 // pred_check_branch
      %170 = sbr.rel (%p168) target = $region25
    $region24: #{tpu_custom_call.1} parent=1 // pred_region
      %v171 = vld [vmem:[#allocation2] sm:$0xff]
      %v172 = vld [vmem:[#allocation2 + $0x8] sm:$0xff]
      %v173 = vmul.f32 %v171, %v171
      %v174 = vmul.f32 %v172, %v172
      %v175 = vsel %vm49, %v173, 0.0
      %176 = vadd.xlane.f32.xlu0 %v175
      %v177 = vpop.xlane.xlu0 %176
      %v178 = vsel %vm49, %v174, 0.0
      %179 = vadd.xlane.f32.xlu0 %v178
      %v180 = vpop.xlane.xlu0 %179
      %v181 = vmax.f32 %v177, 1e-24
      %v182 = vmax.f32 %v180, 1e-24
      %v183 = vrsqrt.pop %v181
      %v184 = vmul.f32 %v183, %v181
      %v185 = vmul.f32 %v184, %v183
      %v186 = vmul.f32 0.5, %v185
      %v187 = vsub.f32 1.5, %v186
      %v188 = vmul.f32 %v183, %v187
      %vm189 = vweird.f32 %v181
      %vm190 = vweird.f32 %v183
      %vm191 = vmor %vm189, %vm190
      %v192 = vsel %vm191, %v183, %v188
      %v193 = vrsqrt.pop %v182
      %v194 = vmul.f32 %v193, %v182
      %v195 = vmul.f32 %v194, %v193
      %v196 = vmul.f32 0.5, %v195
      %v197 = vsub.f32 1.5, %v196
      %v198 = vmul.f32 %v193, %v197
      %vm199 = vweird.f32 %v182
      %vm200 = vweird.f32 %v193
      %vm201 = vmor %vm199, %vm200
      %v202 = vsel %vm201, %v193, %v198
      %v203 = vmul.f32 %v171, %v192
      %v204 = vmul.f32 %v172, %v202
      %v205 = vpack.c.bf16 %v203, %v203
      %v206 = vpack.c.bf16 %v204, %v204
      %vm207 = vcmask 257024
      %208 = vst.msk [vmem:[#allocation3] sm:$0xf] %vm207, %v205
      %209 = vst.msk [vmem:[#allocation3 + $0x4] sm:$0xf] %vm207, %v206
    $region25: #{tpu_custom_call.1} parent=1 // pred_fallthru
      _
    // Predicated region
    $region26: #{tpu_custom_call.1} parent=1 // pred_check
      _
    $region27: #{tpu_custom_call.1} parent=1 // pred_check_branch
      %211 = sbr.rel (0) target = $region29
    $region28: #{tpu_custom_call.1} parent=1 // pred_region
      %213 = vsyncadd [#allocation4], 0
      %s214 = sshll.u32 [#allocation3], 4
      %s215 = int_to_ptr.vmem [resolvable:$true] %s214
      %s216 = sshll.u32 %s4, 4
      %s217 = int_to_ptr.hbm [resolvable:$true] %s216
      %222 = dma.vmem_to_hbm [thread:$0]  %s215, 128, %s217, [#allocation4], 64, 64, 4
    $region29: #{tpu_custom_call.1} parent=1 // pred_fallthru
      _
    // Predicated region
    $region30: #{tpu_custom_call.1} parent=1 // pred_check
      _
    $region31: #{tpu_custom_call.1} parent=1 // pred_check_branch
      %224 = sbr.rel (0) target = $region33
    $region32: #{tpu_custom_call.1} parent=1 // pred_region
      %226 = dma.done [#allocation4], 128
    $region33: #{tpu_custom_call.1} parent=1 // pred_fallthru
      _
    %227 = vsyncpa [#allocation4], 1

</llo_original>
